<compile_context>
chip_gen: v6e
topology: v6e:2x2x1
jax: 0.10.0
libtpu: 0.0.40
codegen_flags: <defaults>
</compile_context>

<pallas_src>
import functools

import jax
import jax.numpy as jnp
from jax import lax
from jax.experimental import pallas as pl
from jax.experimental.pallas import tpu as pltpu


def _round_up(x: int, m: int) -> int:
    return (x + m - 1) // m * m


def _pick_tn(h_pad: int, n_tile: int) -> int:
    """Largest multiple-of-128 divisor of h_pad that is <= n_tile (else h_pad)."""
    if h_pad <= n_tile:
        return h_pad
    tn = h_pad
    for cand in range(128, n_tile + 1, 128):
        if h_pad % cand == 0:
            tn = cand
    return tn


def _vmem_limit_bytes() -> int:
    # Default scoped VMEM is only 16/32 MiB (v5e / v6e+); raise it so the
    # larger token tiles / weight double-buffers can compile.  Derived from the
    # physical capacity when available (v7x only has 64 MiB per core).
    try:
        cap = pltpu.get_tpu_info().vmem_capacity_bytes
    except Exception:
        cap = 64 * 1024 * 1024
    return min(int(cap * 3 // 4), 100 * 1024 * 1024)


def _sparse_moe_kernel(
    x_ref,        # (TM, Hp)      token tile (compute dtype)
    gate_wt_ref,  # (Hp, E_pad)   gate weight, pre-transposed (compute dtype)
    gate_b_ref,   # (1, E_pad)    gate bias (f32), padding lanes = -1e30
    exp_wt_ref,   # (1, Hp, TN)   current expert weight N-tile (y = x @ w)
    exp_b_ref,    # (E_pad, TN)   all expert biases for this N-tile (f32)
    out_ref,      # (TM, TN)
    logits_ref,   # (TM, E_pad)
    combine_ref,  # scratch (TM, E_pad) f32 -- persists across (n, e)
    acc_ref,      # scratch (TM, TN)    f32 -- reduction accumulator over e
    *,
    expert_num: int,
    topk: int,
):
    n_idx = pl.program_id(1)
    e_idx = pl.program_id(2)

    # ---- router: run once per token tile (first (n, e) step) ----------------
    @pl.when(jnp.logical_and(n_idx == 0, e_idx == 0))
    def _router():
        logits = (
            jnp.dot(x_ref[...], gate_wt_ref[...],
                    preferred_element_type=jnp.float32)
            + gate_b_ref[...]
        )
        logits_ref[...] = logits.astype(logits_ref.dtype)

        # top-k on unnormalized softmax numerators (the softmax denominator
        # cancels in the top-k renormalization).  Padded gate lanes carry a
        # -1e30 bias so their numerator is exactly 0 and are never selected.
        m = jnp.max(logits, axis=-1, keepdims=True)
        ex = jnp.exp(logits - m)
        lane = lax.broadcasted_iota(jnp.int32, ex.shape, 1)
        work = jnp.where(lane < expert_num, ex, -jnp.inf)
        combine = jnp.zeros_like(ex)
        topk_sum = jnp.zeros((ex.shape[0], 1), jnp.float32)
        for _ in range(topk):                       # topk is tiny & static
            cur = jnp.max(work, axis=-1, keepdims=True)
            sel = jnp.min(
                jnp.where(work == cur, lane, jnp.int32(ex.shape[1])),
                axis=-1, keepdims=True)             # first-index tie break
            onehot = (lane == sel).astype(jnp.float32)
            combine = combine + onehot * cur
            topk_sum = topk_sum + cur
            work = jnp.where(lane == sel, -jnp.inf, work)
        # approx=False: exact weights; this runs once per tile (not hot path).
        combine_ref[...] = combine * pl.reciprocal(topk_sum, approx=False)

    @pl.when(e_idx == 0)
    def _init_acc():
        acc_ref[...] = jnp.zeros_like(acc_ref)

    # ---- contribution of expert e_idx to this (token, N) tile ---------------
    # Gate weight for this expert = one lane of the combine scratch.
    # NOTE: a 1-lane dynamic slice combine_ref[:, pl.ds(e_idx, 1)] would skip
    # the lane reduce, but dynamic lane-dim slicing is not reliably lowered;
    # this masked reduce is O(TM*128) VPU/XLU vs the O(TM*H*TN) MXU matmul.
    lane = lax.broadcasted_iota(jnp.int32, combine_ref.shape, 1)
    scale = jnp.sum(jnp.where(lane == e_idx, combine_ref[...], 0.0),
                    axis=-1, keepdims=True)                       # (TM, 1)
    y = jnp.dot(x_ref[...], exp_wt_ref[0],
                preferred_element_type=jnp.float32)               # (TM, TN) f32
    acc_ref[...] = acc_ref[...] + scale * y

    @pl.when(e_idx == pl.num_programs(2) - 1)
    def _finalize():
        # Bias hoisted out of the hot loop:  sum_e combine[:, e] * b_e[n-tile].
        bias = jnp.dot(combine_ref[...], exp_b_ref[...],
                       preferred_element_type=jnp.float32)        # (TM, TN)
        out_ref[...] = (acc_ref[...] + bias).astype(out_ref.dtype)


def sparse_expert_moe(x, gate_w, gate_b, exp_w, exp_b, *, topk,
                      token_tile=512, n_tile=512,
                      compute_dtype=jnp.bfloat16):
    """SparseExpert forward.

    x: (B, S, H); gate_w: (E, H); gate_b: (E,); exp_w: (E, H, H); exp_b: (E, H).
    Returns (out (B, S, H), router_logits (B*S, E)) matching the PyTorch module.

    compute_dtype: dtype of the MXU matmul operands (accumulation stays f32).
    bf16 (default) halves weight HBM/VMEM traffic and runs the MXU at native
    rate; pass jnp.float32 for bit-tight parity with an f32 reference.
    """
    B, S, H = x.shape
    E = exp_w.shape[0]
    if topk > E:
        raise ValueError(f"topk={topk} must be <= expert_num={E}")
    T = B * S
    out_dtype = x.dtype
    compute_dtype = jnp.dtype(compute_dtype)

    # ---- tile sizes ----------------------------------------------------------
    TM_UNIT = 16  # sublane granularity safe for both f32 and packed bf16 tiles
    token_tile = _round_up(max(token_tile, TM_UNIT), TM_UNIT)
    TM = min(token_tile, _round_up(T, TM_UNIT))
    if T >= 2 * TM_UNIT and _round_up(T, TM) // TM < 2:
        # Guarantee >= 2 token tiles so the "parallel" axis can shard across
        # TensorCores (v7x megacore) even at small batch / decode shapes.
        TM = max(TM_UNIT, _round_up((T + 1) // 2, TM_UNIT))
    T_pad = _round_up(T, TM)

    E_pad = max(128, _round_up(E, 128))       # lane-dense logits / combine slab
    H_pad = max(128, _round_up(H, 128))       # lane-dense output stores
    TN = _pick_tn(H_pad, n_tile)              # expert-weight output tile

    # ---- host-side layout prep ----------------------------------------------
    # nn.Linear is y = x @ W.T + b; transpose once on the host so the kernel
    # never transposes on the XLU.  Zero-pad the feature dim (contributes 0).
    x_flat = x.reshape(T, H)
    x_flat = jnp.pad(x_flat, ((0, T_pad - T), (0, H_pad - H))).astype(compute_dtype)

    gate_wt = jnp.zeros((H_pad, E_pad), compute_dtype).at[:H, :E].set(
        gate_w.T.astype(compute_dtype))
    # Padded gate-bias lanes get -1e30 so their softmax numerator is exactly 0.
    gate_bp = jnp.full((1, E_pad), -1e30, jnp.float32).at[:, :E].set(
        gate_b.astype(jnp.float32)[None, :])
    exp_wt = jnp.zeros((E, H_pad, H_pad), compute_dtype).at[:, :H, :H].set(
        jnp.transpose(exp_w, (0, 2, 1)).astype(compute_dtype))   # y = x @ w
    exp_bp = jnp.zeros((E_pad, H_pad), jnp.float32).at[:E, :H].set(
        exp_b.astype(jnp.float32))

    kernel = functools.partial(_sparse_moe_kernel, expert_num=E, topk=topk)
    grid = (T_pad // TM, H_pad // TN, E)

    out_pad, logits_pad = pl.pallas_call(
        kernel,
        out_shape=(
            jax.ShapeDtypeStruct((T_pad, H_pad), out_dtype),
            jax.ShapeDtypeStruct((T_pad, E_pad), out_dtype),
        ),
        grid_spec=pltpu.PrefetchScalarGridSpec(
            num_scalar_prefetch=0,
            grid=grid,
            in_specs=[
                pl.BlockSpec((TM, H_pad), lambda t, n, e: (t, 0)),        # x tile
                pl.BlockSpec((H_pad, E_pad), lambda t, n, e: (0, 0)),     # gate W^T
                pl.BlockSpec((1, E_pad), lambda t, n, e: (0, 0)),         # gate b
                pl.BlockSpec((1, H_pad, TN), lambda t, n, e: (e, 0, n)),  # expert W^T N-tile (streamed)
                pl.BlockSpec((E_pad, TN), lambda t, n, e: (0, n)),        # expert biases N-tile
            ],
            out_specs=(
                pl.BlockSpec((TM, TN), lambda t, n, e: (t, n)),           # resident over e
                pl.BlockSpec((TM, E_pad), lambda t, n, e: (t, 0)),        # lane-dense logits
            ),
            scratch_shapes=[
                pltpu.VMEM((TM, E_pad), jnp.float32),                     # combine weights
                pltpu.VMEM((TM, TN), jnp.float32),                        # f32 accumulator
            ],
        ),
        compiler_params=pltpu.CompilerParams(
            dimension_semantics=("parallel", "arbitrary", "arbitrary"),
            vmem_limit_bytes=_vmem_limit_bytes(),
        ),
    )(x_flat, gate_wt, gate_bp, exp_wt, exp_bp)

    out = out_pad[:T, :H].reshape(B, S, H)
    logits = logits_pad[:T, :E]
    return out, logits


def _init_linear(key, out_dim, in_dim):
    # nn.Linear default init: U(-1/sqrt(in), 1/sqrt(in)) for weight and bias.
    kw, kb = jax.random.split(key)
    bound = 1.0 / (in_dim ** 0.5)
    w = jax.random.uniform(kw, (out_dim, in_dim), jnp.float32, -bound, bound)
    b = jax.random.uniform(kb, (out_dim,), jnp.float32, -bound, bound)
    return w, b


def _reference(x, gate_w, gate_b, exp_w, exp_b, *, topk):
    """Pure-JAX reference mirroring SparseExpert.forward."""
    B, S, H = x.shape
    E = exp_w.shape[0]
    hs = x.reshape(-1, H)
    logits = hs @ gate_w.T + gate_b
    probs = jax.nn.softmax(logits, axis=-1)
    w_topk, sel = lax.top_k(probs, topk)
    w_topk = w_topk / jnp.sum(w_topk, axis=-1, keepdims=True)
    combine = jnp.zeros((hs.shape[0], E), x.dtype)
    for k in range(topk):
        combine = combine + jax.nn.one_hot(sel[:, k], E, dtype=x.dtype) * w_topk[:, k:k + 1]
    out = jnp.zeros_like(hs)
    for e in range(E):
        out = out + combine[:, e:e + 1] * (hs @ exp_w[e].T + exp_b[e])
    return out.reshape(B, S, H), logits


if __name__ == "__main__":
    B, S, H = 2, 8, 32
    expert_num, topk = 4, 2

    key = jax.random.PRNGKey(0)
    keys = jax.random.split(key, 3)

    x = jax.random.normal(keys[0], (B, S, H), jnp.float32)
    gate_w, gate_b = _init_linear(keys[1], expert_num, H)

    ek = jax.random.split(keys[2], expert_num)
    exp_params = [_init_linear(k, H, H) for k in ek]
    exp_w = jnp.stack([p[0] for p in exp_params])   # (E, H, H)
    exp_b = jnp.stack([p[1] for p in exp_params])   # (E, H)

    ref_out, ref_logits = _reference(x, gate_w, gate_b, exp_w, exp_b, topk=topk)

    # 1) f32-compute path: tight check against the f32 reference.
    out, router_logits = sparse_expert_moe(
        x, gate_w, gate_b, exp_w, exp_b, topk=topk, compute_dtype=jnp.float32)
    jax.block_until_ready((out, router_logits))
    assert out.shape == (B, S, H)
    assert router_logits.shape == (B * S, expert_num)
    assert jnp.allclose(out, ref_out, rtol=1e-4, atol=1e-4)
    assert jnp.allclose(router_logits, ref_logits, rtol=1e-4, atol=1e-4)

    # 2) default fast path (bf16 MXU operands, f32 accumulation): compare
    #    against a reference evaluated on bf16-rounded matmul operands so the
    #    routing decisions match; remaining delta is accumulation-order noise.
    out_bf, logits_bf = sparse_expert_moe(
        x, gate_w, gate_b, exp_w, exp_b, topk=topk)
    jax.block_until_ready((out_bf, logits_bf))
    r = lambda a: a.astype(jnp.bfloat16).astype(jnp.float32)
    ref_out_bf, ref_logits_bf = _reference(
        r(x), r(gate_w), gate_b, r(exp_w), exp_b, topk=topk)
    assert out_bf.shape == (B, S, H)
    assert jnp.allclose(out_bf, ref_out_bf, rtol=2e-2, atol=2e-2)
    assert jnp.allclose(logits_bf, ref_logits_bf, rtol=2e-2, atol=2e-2)

    print("KERNEL_OK")
</pallas_src>

<mosaic_0001>
module attributes {stable_mosaic.version = 11 : i64} {
  func.func @_sparse_moe_kernel(%arg0: i32, %arg1: i32, %arg2: i32, %arg3: memref<16x128xf32, #tpu.memory_space<vmem>>, %arg4: memref<128x128xf32, #tpu.memory_space<vmem>>, %arg5: memref<1x128xf32, #tpu.memory_space<vmem>>, %arg6: memref<1x128x128xf32, #tpu.memory_space<vmem>>, %arg7: memref<128x128xf32, #tpu.memory_space<vmem>>, %arg8: memref<16x128xf32, #tpu.memory_space<vmem>>, %arg9: memref<16x128xf32, #tpu.memory_space<vmem>>, %arg10: memref<16x128xf32, #tpu.memory_space<vmem>>, %arg11: memref<16x128xf32, #tpu.memory_space<vmem>>) attributes {dimension_semantics = [#tpu.dimension_semantics<parallel>, #tpu.dimension_semantics<arbitrary>, #tpu.dimension_semantics<arbitrary>], iteration_bounds = array<i64: 1, 1, 4>, scalar_prefetch = 0 : i64, scratch_operands = 2 : i64, tpu.core_type = #tpu.core_type<tc>, window_params = [{transform_indices = @transform_0, window_bounds = array<i64: 16, 128>}, {pipeline_mode = #tpu.pipeline_mode<synchronous>, transform_indices = @transform_1, window_bounds = array<i64: 128, 128>}, {pipeline_mode = #tpu.pipeline_mode<synchronous>, transform_indices = @transform_2, window_bounds = array<i64: 1, 128>}, {transform_indices = @transform_3, window_bounds = array<i64: 1, 128, 128>}, {transform_indices = @transform_4, window_bounds = array<i64: 128, 128>}, {transform_indices = @transform_5, window_bounds = array<i64: 16, 128>}, {transform_indices = @transform_6, window_bounds = array<i64: 16, 128>}]} {
    %c0_i32 = arith.constant 0 : i32
    %0 = arith.cmpi eq, %arg1, %c0_i32 : i32
    %c0_i32_0 = arith.constant 0 : i32
    %1 = arith.cmpi eq, %arg2, %c0_i32_0 : i32
    %2 = arith.andi %0, %1 : i1
    %3 = arith.extui %2 : i1 to i32
    %c0_i32_1 = arith.constant 0 : i32
    %4 = arith.cmpi ne, %3, %c0_i32_1 : i32
    scf.if %4 {
      %c0_17 = arith.constant 0 : index
      %c0_18 = arith.constant 0 : index
      %28 = vector.load %arg3[%c0_17, %c0_18] : memref<16x128xf32, #tpu.memory_space<vmem>>, vector<16x128xf32>
      %c0_19 = arith.constant 0 : index
      %c0_20 = arith.constant 0 : index
      %29 = vector.load %arg4[%c0_19, %c0_20] : memref<128x128xf32, #tpu.memory_space<vmem>>, vector<128x128xf32>
      %cst_21 = arith.constant dense<0.000000e+00> : vector<16x128xf32>
      %30 = tpu.matmul %28, %29, %cst_21 {dimension_numbers = #tpu.dot_dimension_numbers<[1], [0], [0], [1], [0, 0, 1, 1], [], []>} : vector<16x128xf32>, vector<128x128xf32>, vector<16x128xf32> -> vector<16x128xf32>
      %c0_22 = arith.constant 0 : index
      %c0_23 = arith.constant 0 : index
      %31 = vector.load %arg5[%c0_22, %c0_23] : memref<1x128xf32, #tpu.memory_space<vmem>>, vector<1x128xf32>
      %32 = vector.broadcast %31 : vector<1x128xf32> to vector<16x128xf32>
      %33 = arith.addf %30, %32 : vector<16x128xf32>
      %c0_24 = arith.constant 0 : index
      %c0_25 = arith.constant 0 : index
      %34 = vector.load %arg9[%c0_24, %c0_25] : memref<16x128xf32, #tpu.memory_space<vmem>>, vector<16x128xf32>
      tpu.vector_store %arg9[%c0_24, %c0_25], %33 {strides = array<i32>} : memref<16x128xf32, #tpu.memory_space<vmem>>, vector<16x128xf32>,
      %cst_26 = arith.constant dense<0xFF800000> : vector<16xf32>
      %35 = vector.multi_reduction <maximumf>, %33, %cst_26 [1] : vector<16x128xf32> to vector<16xf32>
      %36 = vector.shape_cast %35 : vector<16xf32> to vector<16x1xf32>
      %37 = vector.broadcast %36 : vector<16x1xf32> to vector<16x128xf32>
      %38 = arith.subf %33, %37 : vector<16x128xf32>
      %39 = math.exp %38 : vector<16x128xf32>
      %40 = tpu.iota {dimensions = array<i32: 1>} : vector<16x128xi32>
      %c4_i32 = arith.constant 4 : i32
      %41 = vector.broadcast %c4_i32 : i32 to vector<16x128xi32>
      %42 = arith.cmpi slt, %40, %41 : vector<16x128xi32>
      %cst_27 = arith.constant 0xFF800000 : f32
      %43 = vector.broadcast %cst_27 : f32 to vector<16x128xf32>
      %44 = arith.select %42, %39, %43 : vector<16x128xi1>, vector<16x128xf32>
      %cst_28 = arith.constant 0.000000e+00 : f32
      %45 = vector.broadcast %cst_28 : f32 to vector<16x128xf32>
      %cst_29 = arith.constant 0.000000e+00 : f32
      %46 = vector.broadcast %cst_29 : f32 to vector<16x1xf32>
      %cst_30 = arith.constant dense<0xFF800000> : vector<16xf32>
      %47 = vector.multi_reduction <maximumf>, %44, %cst_30 [1] : vector<16x128xf32> to vector<16xf32>
      %48 = vector.shape_cast %47 : vector<16xf32> to vector<16x1xf32>
      %49 = vector.broadcast %48 : vector<16x1xf32> to vector<16x128xf32>
      %50 = arith.cmpf oeq, %44, %49 : vector<16x128xf32>
      %c128_i32 = arith.constant 128 : i32
      %51 = vector.broadcast %c128_i32 : i32 to vector<16x128xi32>
      %52 = arith.select %50, %40, %51 : vector<16x128xi1>, vector<16x128xi32>
      %cst_31 = arith.constant dense<2147483647> : vector<16xi32>
      %53 = vector.multi_reduction <minsi>, %52, %cst_31 [1] : vector<16x128xi32> to vector<16xi32>
      %54 = vector.shape_cast %53 : vector<16xi32> to vector<16x1xi32>
      %55 = vector.broadcast %54 : vector<16x1xi32> to vector<16x128xi32>
      %56 = arith.cmpi eq, %40, %55 : vector<16x128xi32>
      %57 = arith.extui %56 : vector<16x128xi1> to vector<16x128xi32>
      %58 = arith.sitofp %57 : vector<16x128xi32> to vector<16x128xf32>
      %59 = vector.broadcast %48 : vector<16x1xf32> to vector<16x128xf32>
      %60 = arith.mulf %58, %59 : vector<16x128xf32>
      %61 = arith.addf %45, %60 : vector<16x128xf32>
      %62 = arith.addf %46, %48 : vector<16x1xf32>
      %63 = vector.broadcast %54 : vector<16x1xi32> to vector<16x128xi32>
      %64 = arith.cmpi eq, %40, %63 : vector<16x128xi32>
      %cst_32 = arith.constant 0xFF800000 : f32
      %65 = vector.broadcast %cst_32 : f32 to vector<16x128xf32>
      %66 = arith.select %64, %65, %44 : vector<16x128xi1>, vector<16x128xf32>
      %cst_33 = arith.constant dense<0xFF800000> : vector<16xf32>
      %67 = vector.multi_reduction <maximumf>, %66, %cst_33 [1] : vector<16x128xf32> to vector<16xf32>
      %68 = vector.shape_cast %67 : vector<16xf32> to vector<16x1xf32>
      %69 = vector.broadcast %68 : vector<16x1xf32> to vector<16x128xf32>
      %70 = arith.cmpf oeq, %66, %69 : vector<16x128xf32>
      %c128_i32_34 = arith.constant 128 : i32
      %71 = vector.broadcast %c128_i32_34 : i32 to vector<16x128xi32>
      %72 = arith.select %70, %40, %71 : vector<16x128xi1>, vector<16x128xi32>
      %cst_35 = arith.constant dense<2147483647> : vector<16xi32>
      %73 = vector.multi_reduction <minsi>, %72, %cst_35 [1] : vector<16x128xi32> to vector<16xi32>
      %74 = vector.shape_cast %73 : vector<16xi32> to vector<16x1xi32>
      %75 = vector.broadcast %74 : vector<16x1xi32> to vector<16x128xi32>
      %76 = arith.cmpi eq, %40, %75 : vector<16x128xi32>
      %77 = arith.extui %76 : vector<16x128xi1> to vector<16x128xi32>
      %78 = arith.sitofp %77 : vector<16x128xi32> to vector<16x128xf32>
      %79 = vector.broadcast %68 : vector<16x1xf32> to vector<16x128xf32>
      %80 = arith.mulf %78, %79 : vector<16x128xf32>
      %81 = arith.addf %61, %80 : vector<16x128xf32>
      %82 = arith.addf %62, %68 : vector<16x1xf32>
      %83 = tpu.reciprocal %82 : vector<16x1xf32> -> vector<16x1xf32>
      %84 = vector.broadcast %83 : vector<16x1xf32> to vector<16x128xf32>
      %85 = arith.mulf %81, %84 : vector<16x128xf32>
      %c0_36 = arith.constant 0 : index
      %c0_37 = arith.constant 0 : index
      %86 = vector.load %arg10[%c0_36, %c0_37] : memref<16x128xf32, #tpu.memory_space<vmem>>, vector<16x128xf32>
      tpu.vector_store %arg10[%c0_36, %c0_37], %85 {strides = array<i32>} : memref<16x128xf32, #tpu.memory_space<vmem>>, vector<16x128xf32>,
    } else {
    }
    %c0_i32_2 = arith.constant 0 : i32
    %5 = arith.cmpi eq, %arg2, %c0_i32_2 : i32
    %6 = arith.extui %5 : i1 to i32
    %c0_i32_3 = arith.constant 0 : i32
    %7 = arith.cmpi ne, %6, %c0_i32_3 : i32
    scf.if %7 {
      %cst_17 = arith.constant 0.000000e+00 : f32
      %28 = vector.broadcast %cst_17 : f32 to vector<16x128xf32>
      %c0_18 = arith.constant 0 : index
      %c0_19 = arith.constant 0 : index
      %29 = vector.load %arg11[%c0_18, %c0_19] : memref<16x128xf32, #tpu.memory_space<vmem>>, vector<16x128xf32>
      tpu.vector_store %arg11[%c0_18, %c0_19], %28 {strides = array<i32>} : memref<16x128xf32, #tpu.memory_space<vmem>>, vector<16x128xf32>,
    } else {
    }
    %8 = tpu.iota {dimensions = array<i32: 1>} : vector<16x128xi32>
    %9 = vector.broadcast %arg2 : i32 to vector<16x128xi32>
    %10 = arith.cmpi eq, %8, %9 : vector<16x128xi32>
    %c0 = arith.constant 0 : index
    %c0_4 = arith.constant 0 : index
    %11 = vector.load %arg10[%c0, %c0_4] : memref<16x128xf32, #tpu.memory_space<vmem>>, vector<16x128xf32>
    %cst = arith.constant 0.000000e+00 : f32
    %12 = vector.broadcast %cst : f32 to vector<16x128xf32>
    %13 = arith.select %10, %11, %12 : vector<16x128xi1>, vector<16x128xf32>
    %cst_5 = arith.constant dense<0.000000e+00> : vector<16xf32>
    %14 = vector.multi_reduction <add>, %13, %cst_5 [1] : vector<16x128xf32> to vector<16xf32>
    %15 = vector.shape_cast %14 : vector<16xf32> to vector<16x1xf32>
    %c0_6 = arith.constant 0 : index
    %c0_7 = arith.constant 0 : index
    %16 = vector.load %arg3[%c0_6, %c0_7] : memref<16x128xf32, #tpu.memory_space<vmem>>, vector<16x128xf32>
    %c0_8 = arith.constant 0 : index
    %c0_9 = arith.constant 0 : index
    %c0_10 = arith.constant 0 : index
    %17 = vector.load %arg6[%c0_8, %c0_9, %c0_10] : memref<1x128x128xf32, #tpu.memory_space<vmem>>, vector<1x128x128xf32>
    %18 = vector.shape_cast %17 : vector<1x128x128xf32> to vector<128x128xf32>
    %cst_11 = arith.constant dense<0.000000e+00> : vector<16x128xf32>
    %19 = tpu.matmul %16, %18, %cst_11 {dimension_numbers = #tpu.dot_dimension_numbers<[1], [0], [0], [1], [0, 0, 1, 1], [], []>} : vector<16x128xf32>, vector<128x128xf32>, vector<16x128xf32> -> vector<16x128xf32>
    %c0_12 = arith.constant 0 : index
    %c0_13 = arith.constant 0 : index
    %20 = vector.load %arg11[%c0_12, %c0_13] : memref<16x128xf32, #tpu.memory_space<vmem>>, vector<16x128xf32>
    %21 = vector.broadcast %15 : vector<16x1xf32> to vector<16x128xf32>
    %22 = arith.mulf %21, %19 : vector<16x128xf32>
    %23 = arith.addf %20, %22 : vector<16x128xf32>
    %c0_14 = arith.constant 0 : index
    %c0_15 = arith.constant 0 : index
    %24 = vector.load %arg11[%c0_14, %c0_15] : memref<16x128xf32, #tpu.memory_space<vmem>>, vector<16x128xf32>
    tpu.vector_store %arg11[%c0_14, %c0_15], %23 {strides = array<i32>} : memref<16x128xf32, #tpu.memory_space<vmem>>, vector<16x128xf32>,
    %c3_i32 = arith.constant 3 : i32
    %25 = arith.cmpi eq, %arg2, %c3_i32 : i32
    %26 = arith.extui %25 : i1 to i32
    %c0_i32_16 = arith.constant 0 : i32
    %27 = arith.cmpi ne, %26, %c0_i32_16 : i32
    scf.if %27 {
      %c0_17 = arith.constant 0 : index
      %c0_18 = arith.constant 0 : index
      %28 = vector.load %arg10[%c0_17, %c0_18] : memref<16x128xf32, #tpu.memory_space<vmem>>, vector<16x128xf32>
      %c0_19 = arith.constant 0 : index
      %c0_20 = arith.constant 0 : index
      %29 = vector.load %arg7[%c0_19, %c0_20] : memref<128x128xf32, #tpu.memory_space<vmem>>, vector<128x128xf32>
      %cst_21 = arith.constant dense<0.000000e+00> : vector<16x128xf32>
      %30 = tpu.matmul %28, %29, %cst_21 {dimension_numbers = #tpu.dot_dimension_numbers<[1], [0], [0], [1], [0, 0, 1, 1], [], []>} : vector<16x128xf32>, vector<128x128xf32>, vector<16x128xf32> -> vector<16x128xf32>
      %c0_22 = arith.constant 0 : index
      %c0_23 = arith.constant 0 : index
      %31 = vector.load %arg11[%c0_22, %c0_23] : memref<16x128xf32, #tpu.memory_space<vmem>>, vector<16x128xf32>
      %32 = arith.addf %31, %30 : vector<16x128xf32>
      %c0_24 = arith.constant 0 : index
      %c0_25 = arith.constant 0 : index
      %33 = vector.load %arg8[%c0_24, %c0_25] : memref<16x128xf32, #tpu.memory_space<vmem>>, vector<16x128xf32>
      tpu.vector_store %arg8[%c0_24, %c0_25], %32 {strides = array<i32>} : memref<16x128xf32, #tpu.memory_space<vmem>>, vector<16x128xf32>,
    } else {
    }
    return
  }
  func.func @transform_0(%arg0: i32, %arg1: i32, %arg2: i32) -> (i32, i32) {
    %c0_i32 = arith.constant 0 : i32
    %c0_i32_0 = arith.constant 0 : i32
    return %arg0, %c0_i32 : i32, i32
  }
  func.func @transform_1(%arg0: i32, %arg1: i32, %arg2: i32) -> (i32, i32) {
    %c0_i32 = arith.constant 0 : i32
    %c0_i32_0 = arith.constant 0 : i32
    %c0_i32_1 = arith.constant 0 : i32
    return %c0_i32, %c0_i32_0 : i32, i32
  }
  func.func @transform_2(%arg0: i32, %arg1: i32, %arg2: i32) -> (i32, i32) {
    %c0_i32 = arith.constant 0 : i32
    %c0_i32_0 = arith.constant 0 : i32
    %c0_i32_1 = arith.constant 0 : i32
    return %c0_i32, %c0_i32_0 : i32, i32
  }
  func.func @transform_3(%arg0: i32, %arg1: i32, %arg2: i32) -> (i32, i32, i32) {
    %c0_i32 = arith.constant 0 : i32
    %c0_i32_0 = arith.constant 0 : i32
    return %arg2, %c0_i32, %arg1 : i32, i32, i32
  }
  func.func @transform_4(%arg0: i32, %arg1: i32, %arg2: i32) -> (i32, i32) {
    %c0_i32 = arith.constant 0 : i32
    %c0_i32_0 = arith.constant 0 : i32
    return %c0_i32, %arg1 : i32, i32
  }
  func.func @transform_5(%arg0: i32, %arg1: i32, %arg2: i32) -> (i32, i32) {
    %c0_i32 = arith.constant 0 : i32
    return %arg0, %arg1 : i32, i32
  }
  func.func @transform_6(%arg0: i32, %arg1: i32, %arg2: i32) -> (i32, i32) {
    %c0_i32 = arith.constant 0 : i32
    %c0_i32_0 = arith.constant 0 : i32
    return %arg0, %c0_i32 : i32, i32
  }
}

</mosaic_0001>

<llo_original>
// kernel: tpu_custom_call.1
$region0: #{tpu_custom_call.1}
  #allocation0 [shape = 'u32[]', space=smem, size = 0x4, offset = 0x4, fixed_abs, tag = 'smem constant byte address 0x4 - core index']
  #allocation1 [shape = 'u32[144,128]{1,0:T(1,128)}', space=vmem, size = 0x12000, scoped, tag = 'internal scratch']
  #allocation2 [shape = 'f32[16,128]{1,0:T(8,128)}', space=vmem, size = 0x2000, scoped, tag = 'scratch operand']
  #allocation3 [shape = 'f32[16,128]{1,0:T(8,128)}', space=vmem, size = 0x2000, scoped, tag = 'scratch operand']
  %s0 = inlined_call_operand.hbm [shape: f32[16,128], index: 0, kind: input, shape index: {}]
  %s1 = inlined_call_operand.hbm [shape: f32[128,128], index: 1, kind: input, shape index: {}]
  %s2 = inlined_call_operand.vmem [shape: f32[1,128], index: 2, kind: input, shape index: {}]
  %s3 = inlined_call_operand.hbm [shape: f32[4,128,128], index: 3, kind: input, shape index: {}]
  %s4 = inlined_call_operand.hbm [shape: f32[128,128], index: 4, kind: input, shape index: {}]
  %s5 = inlined_call_operand.hbm [shape: f32[16,128], index: 5, kind: output, shape index: {0}]
  %s6 = inlined_call_operand.hbm [shape: f32[16,128], index: 6, kind: output, shape index: {1}]
  %7 = xla_tuple %s5, %s6
  %s8 = sld [smem:[#allocation0]]
  $region89: #{tpu_custom_call.1} parent=0
    _
  %s10 = ssub.s32 1, %s8
  %s11 = scalar_select 0, %s10, %s8
  $region1: #{tpu_custom_call.1} parent=0
    #allocation4 [shape = 'u8[8192]{0}', space=vmem, size = 0x2000, scoped, tag = 'input window, operand 0, single buffered']
    #allocation5 [shape = 's32[2]{0}', space=sflag, size = 0x8, scoped, tag = 'scoped memory for tpu_custom_call.1']
    #allocation6 [shape = 's32[2]{0}', space=sflag, size = 0x8, scoped, tag = 'scoped memory for tpu_custom_call.1']
    #allocation7 [shape = 'u8[65536]{0}', space=vmem, size = 0x10000, scoped, tag = 'input window, operand 1, single buffered']
    #allocation8 [shape = 's32[1]{0}', space=sflag, size = 0x4, scoped, tag = 'scoped memory for tpu_custom_call.1']
    #allocation9 [shape = 'u8[131072]{0}', space=vmem, size = 0x20000, scoped, tag = 'input window, operand 3']
    #allocation10 [shape = 'u8[65536]{0}', space=vmem, size = 0x10000, scoped, tag = 'input window, operand 4, single buffered']
    #allocation11 [shape = 'u8[8192]{0}', space=vmem, size = 0x2000, scoped, tag = 'output window, operand 0, single buffered']
    #allocation12 [shape = 'u8[8192]{0}', space=vmem, size = 0x2000, scoped, tag = 'output window, operand 1, single buffered']
    #allocation13 [shape = 's32[1]{0}', space=sflag, size = 0x4, scoped, tag = 'scoped memory for tpu_custom_call.1']
    %12 = vsyncpa [#allocation5], 0
    %13 = vsyncpa [#allocation8], 0
    %14 = vsyncpa [#allocation6], 0
    %15 = vsyncpa [#allocation13], 0
    loop: start=0, step=1, limit=6
    $region2: #{tpu_custom_call.1} parent=1 // loop_pre_header
      _
    $region3: #{tpu_custom_call.1} parent=1 // loop_header
      %s17 = sphi 0, %s21
      %p18 = scmp.ge.s32.totalorder %s17, 6
      %s24 = sphi 0, %s43
      %s25 = sphi 0, %s39
      %s26 = sphi 0, %s35
      %s27 = sphi 0, %s24
      %s28 = sphi 0, %s25
      %s29 = sphi 0, %s26
      %s30 = sphi 0, %s27
      %s31 = sphi 0, %s28
      %s32 = sphi 0, %s29
      %s46 = sphi 0, %s48
      %s49 = sphi 0, %s46
      %s50 = sphi 0, %s49
      %s66 = sphi 0, %s50
      %s70 = sphi 0, %s70
      %s72 = sphi 0, %s70
      %s73 = sphi 0, %s72
      %s87 = sphi 0, %s73
      %s91 = sphi 0, %s91
      %s93 = sphi 0, %s91
      %s94 = sphi 0, %s93
      %s108 = sphi 0, %s94
      %s116 = sphi 0, %s118
      %s119 = sphi 0, %s116
      %s120 = sphi 0, %s119
      %s136 = sphi 0, %s120
      %s142 = sphi 0, %s144
      %s145 = sphi 0, %s142
      %s146 = sphi 0, %s145
      %s162 = sphi 0, %s146
      %s170 = sphi 0, %s172
      %s173 = sphi 0, %s170
      %s174 = sphi 0, %s173
      %s190 = sphi 0, %s174
      %s196 = sphi 0, %s198
      %s199 = sphi 0, %s196
      %s200 = sphi 0, %s199
      %s216 = sphi 0, %s200
    $region4: #{tpu_custom_call.1} parent=1 // loop_header_branch
      %20 = sbr.rel (%p18) target = $region8
    $region5: #{tpu_custom_call.1} parent=1 // loop_body
      %s22 = ssub.s32 %s17, 1
      %s23 = ssub.s32 %s17, 2
      %s33 = sadd.s32 1, %s26
      %p34 = scmp.ge.s32.totalorder %s33, 4
      %s35 = scalar_select %p34, 0, %s33
      %s36 = sadd.s32 1, %s25
      %s37 = scalar_select %p34, %s36, %s25
      %p38 = scmp.ge.s32.totalorder %s37, 1
      %s39 = scalar_select %p38, 0, %s37
      %s40 = sadd.s32 1, %s24
      %s41 = scalar_select %p38, %s40, %s24
      %p42 = scmp.ge.s32.totalorder %s41, 1
      %s43 = scalar_select %p42, 0, %s41
      %s44 = ssub.s32 %s24, %s43
      %p45 = scmp.eq.s32.totalorder %s44, 0
      %s47 = sadd.s32 %s46, 1
      %s48 = scalar_select %p45, %s46, %s47
      %p51 = pneg %p45
      %p52 = scmp.eq.s32.totalorder %s17, 3
      %p53 = por %p51, %p52
      %p54 = scmp.ne.s32.totalorder %s46, %s49
      %p55 = scmp.eq.s32.totalorder %s17, 0
      %p56 = por %p54, %p55
      %p57 = scmp.ne.s32.totalorder %s46, %s49
      %p58 = scmp.eq.s32.totalorder %s22, 3
      %p59 = por %p57, %p58
      %p60 = scmp.ne.s32.totalorder %s49, %s50
      %p61 = scmp.eq.s32.totalorder %s22, 0
      %p62 = por %p60, %p61
      %p63 = scmp.ne.s32.totalorder %s49, %s50
      %p64 = scmp.eq.s32.totalorder %s23, 3
      %p65 = por %p63, %p64
      %p67 = scmp.ne.s32.totalorder %s50, %s66
      %p68 = scmp.eq.s32.totalorder %s23, 0
      %p69 = por %p67, %p68
      %s71 = sadd.s32 %s70, 1
      %p74 = scmp.eq.s32.totalorder %s17, 3
      %p75 = scmp.ne.s32.totalorder %s70, %s72
      %p76 = scmp.eq.s32.totalorder %s17, 0
      %p77 = por %p75, %p76
      %p78 = scmp.ne.s32.totalorder %s70, %s72
      %p79 = scmp.eq.s32.totalorder %s22, 3
      %p80 = por %p78, %p79
      %p81 = scmp.ne.s32.totalorder %s72, %s73
      %p82 = scmp.eq.s32.totalorder %s22, 0
      %p83 = por %p81, %p82
      %p84 = scmp.ne.s32.totalorder %s72, %s73
      %p85 = scmp.eq.s32.totalorder %s23, 3
      %p86 = por %p84, %p85
      %p88 = scmp.ne.s32.totalorder %s73, %s87
      %p89 = scmp.eq.s32.totalorder %s23, 0
      %p90 = por %p88, %p89
      %s92 = sadd.s32 %s91, 1
      %p95 = scmp.eq.s32.totalorder %s17, 3
      %p96 = scmp.ne.s32.totalorder %s91, %s93
      %p97 = scmp.eq.s32.totalorder %s17, 0
      %p98 = por %p96, %p97
      %p99 = scmp.ne.s32.totalorder %s91, %s93
      %p100 = scmp.eq.s32.totalorder %s22, 3
      %p101 = por %p99, %p100
      %p102 = scmp.ne.s32.totalorder %s93, %s94
      %p103 = scmp.eq.s32.totalorder %s22, 0
      %p104 = por %p102, %p103
      %p105 = scmp.ne.s32.totalorder %s93, %s94
      %p106 = scmp.eq.s32.totalorder %s23, 3
      %p107 = por %p105, %p106
      %p109 = scmp.ne.s32.totalorder %s94, %s108
      %p110 = scmp.eq.s32.totalorder %s23, 0
      %p111 = por %p109, %p110
      %s112 = ssub.s32 %s26, %s35
      %s113 = ssub.s32 %s25, %s39
      %s114 = sor.u32 %s112, %s113
      %p115 = scmp.eq.s32.totalorder %s114, 0
      %s117 = sadd.s32 %s116, 1
      %s118 = scalar_select %p115, %s116, %s117
      %p121 = pneg %p115
      %p122 = scmp.eq.s32.totalorder %s17, 3
      %p123 = por %p121, %p122
      %p124 = scmp.ne.s32.totalorder %s116, %s119
      %p125 = scmp.eq.s32.totalorder %s17, 0
      %p126 = por %p124, %p125
      %p127 = scmp.ne.s32.totalorder %s116, %s119
      %p128 = scmp.eq.s32.totalorder %s22, 3
      %p129 = por %p127, %p128
      %p130 = scmp.ne.s32.totalorder %s119, %s120
      %p131 = scmp.eq.s32.totalorder %s22, 0
      %p132 = por %p130, %p131
      %p133 = scmp.ne.s32.totalorder %s119, %s120
      %p134 = scmp.eq.s32.totalorder %s23, 3
      %p135 = por %p133, %p134
      %p137 = scmp.ne.s32.totalorder %s120, %s136
      %p138 = scmp.eq.s32.totalorder %s23, 0
      %p139 = por %p137, %p138
      %s140 = ssub.s32 %s25, %s39
      %p141 = scmp.eq.s32.totalorder %s140, 0
      %s143 = sadd.s32 %s142, 1
      %s144 = scalar_select %p141, %s142, %s143
      %p147 = pneg %p141
      %p148 = scmp.eq.s32.totalorder %s17, 3
      %p149 = por %p147, %p148
      %p150 = scmp.ne.s32.totalorder %s142, %s145
      %p151 = scmp.eq.s32.totalorder %s17, 0
      %p152 = por %p150, %p151
      %p153 = scmp.ne.s32.totalorder %s142, %s145
      %p154 = scmp.eq.s32.totalorder %s22, 3
      %p155 = por %p153, %p154
      %p156 = scmp.ne.s32.totalorder %s145, %s146
      %p157 = scmp.eq.s32.totalorder %s22, 0
      %p158 = por %p156, %p157
      %p159 = scmp.ne.s32.totalorder %s145, %s146
      %p160 = scmp.eq.s32.totalorder %s23, 3
      %p161 = por %p159, %p160
      %p163 = scmp.ne.s32.totalorder %s146, %s162
      %p164 = scmp.eq.s32.totalorder %s23, 0
      %p165 = por %p163, %p164
      %s166 = ssub.s32 %s24, %s43
      %s167 = ssub.s32 %s25, %s39
      %s168 = sor.u32 %s166, %s167
      %p169 = scmp.eq.s32.totalorder %s168, 0
      %s171 = sadd.s32 %s170, 1
      %s172 = scalar_select %p169, %s170, %s171
      %p175 = pneg %p169
      %p176 = scmp.eq.s32.totalorder %s17, 3
      %p177 = por %p175, %p176
      %p178 = scmp.ne.s32.totalorder %s170, %s173
      %p179 = scmp.eq.s32.totalorder %s17, 0
      %p180 = por %p178, %p179
      %p181 = scmp.ne.s32.totalorder %s170, %s173
      %p182 = scmp.eq.s32.totalorder %s22, 3
      %p183 = por %p181, %p182
      %p184 = scmp.ne.s32.totalorder %s173, %s174
      %p185 = scmp.eq.s32.totalorder %s22, 0
      %p186 = por %p184, %p185
      %p187 = scmp.ne.s32.totalorder %s173, %s174
      %p188 = scmp.eq.s32.totalorder %s23, 3
      %p189 = por %p187, %p188
      %p191 = scmp.ne.s32.totalorder %s174, %s190
      %p192 = scmp.eq.s32.totalorder %s23, 0
      %p193 = por %p191, %p192
      %s194 = ssub.s32 %s24, %s43
      %p195 = scmp.eq.s32.totalorder %s194, 0
      %s197 = sadd.s32 %s196, 1
      %s198 = scalar_select %p195, %s196, %s197
      %p201 = pneg %p195
      %p202 = scmp.eq.s32.totalorder %s17, 3
      %p203 = por %p201, %p202
      %p204 = scmp.ne.s32.totalorder %s196, %s199
      %p205 = scmp.eq.s32.totalorder %s17, 0
      %p206 = por %p204, %p205
      %p207 = scmp.ne.s32.totalorder %s196, %s199
      %p208 = scmp.eq.s32.totalorder %s22, 3
      %p209 = por %p207, %p208
      %p210 = scmp.ne.s32.totalorder %s199, %s200
      %p211 = scmp.eq.s32.totalorder %s22, 0
      %p212 = por %p210, %p211
      %p213 = scmp.ne.s32.totalorder %s199, %s200
      %p214 = scmp.eq.s32.totalorder %s23, 3
      %p215 = por %p213, %p214
      %p217 = scmp.ne.s32.totalorder %s200, %s216
      %p218 = scmp.eq.s32.totalorder %s23, 0
      %p219 = por %p217, %p218
      %p220 = scmp.le.s32.totalorder 1, %s17
      %p221 = scmp.lt.s32.totalorder %s17, 5
      %p222 = pnand %p220, %p221
      %p223 = pneg %p222
      // Predicated region
      $region9: #{tpu_custom_call.1} parent=5 // pred_check
        _
      $region10: #{tpu_custom_call.1} parent=5 // pred_check_branch
        %225 = sbr.rel (%p222) target = $region12
      $region11: #{tpu_custom_call.1} parent=5 // pred_region
        %s226 = ssub.s32 %s17, 1
        // Predicated region
        $region13: #{tpu_custom_call.1} parent=11 // pred_check
          %p227 = pneg %p62
        $region14: #{tpu_custom_call.1} parent=11 // pred_check_branch
          %229 = sbr.rel (%p227) target = $region16
        $region15: #{tpu_custom_call.1} parent=11 // pred_region
          %s230 = smul.u32 2, %s27
          %s232 = ssub.s32 256, 256
          %233 = vsyncadd [#allocation5], %s232
          %s234 = smul.addr %s230, 128
          %s235 = scalar_lea.hbm %s0, %s234
          %s236 = sshll.u32 [#allocation4], 4
          %s237 = int_to_ptr.vmem [resolvable:$true] %s236
          %242 = dma.hbm_to_vmem [thread:$0]  %s235, 256, %s237, [#allocation5], 128, 128, 8
        $region16: #{tpu_custom_call.1} parent=11 // pred_fallthru
          _
        // Predicated region
        $region17: #{tpu_custom_call.1} parent=11 // pred_check
          %p243 = pneg %p83
        $region18: #{tpu_custom_call.1} parent=11 // pred_check_branch
          %245 = sbr.rel (%p243) target = $region20
        $region19: #{tpu_custom_call.1} parent=11 // pred_region
          %s247 = ssub.s32 2048, 2048
          %248 = vsyncadd [#allocation8], %s247
          %s249 = sshll.u32 [#allocation7], 4
          %s250 = int_to_ptr.vmem [resolvable:$true] %s249
          %255 = dma.hbm_to_vmem [thread:$0]  %s1, 2048, %s250, [#allocation8], 128, 128, 8
        $region20: #{tpu_custom_call.1} parent=11 // pred_fallthru
          _
        // Predicated region
        $region21: #{tpu_custom_call.1} parent=11 // pred_check
          %p256 = pneg %p104
        $region22: #{tpu_custom_call.1} parent=11 // pred_check_branch
          %258 = sbr.rel (%p256) target = $region24
        $region23: #{tpu_custom_call.1} parent=11 // pred_region
          _
        $region24: #{tpu_custom_call.1} parent=11 // pred_fallthru
          _
        // Predicated region
        $region25: #{tpu_custom_call.1} parent=11 // pred_check
          %p259 = pneg %p158
        $region26: #{tpu_custom_call.1} parent=11 // pred_check_branch
          %261 = sbr.rel (%p259) target = $region28
        $region27: #{tpu_custom_call.1} parent=11 // pred_region
          %s263 = ssub.s32 2048, 2048
          %264 = vsyncadd [#allocation8], %s263
          %s265 = smul.addr %s28, 128
          %s266 = scalar_lea.hbm %s4, %s265
          %s267 = sshll.u32 [#allocation10], 4
          %s268 = int_to_ptr.vmem [resolvable:$true] %s267
          %273 = dma.hbm_to_vmem [thread:$0]  %s266, 2048, %s268, [#allocation8], 128, 128, 8
        $region28: #{tpu_custom_call.1} parent=11 // pred_fallthru
          _
      $region12: #{tpu_custom_call.1} parent=5 // pred_fallthru
        _
      %p274 = scmp.lt.s32.totalorder %s17, 4
      // Predicated region
      $region29: #{tpu_custom_call.1} parent=5 // pred_check
        %p275 = pneg %p274
      $region30: #{tpu_custom_call.1} parent=5 // pred_check_branch
        %277 = sbr.rel (%p275) target = $region32
      $region31: #{tpu_custom_call.1} parent=5 // pred_region
        // Predicated region
        $region33: #{tpu_custom_call.1} parent=31 // pred_check
          %p278 = pneg %p126
        $region34: #{tpu_custom_call.1} parent=31 // pred_check_branch
          %280 = sbr.rel (%p278) target = $region36
        $region35: #{tpu_custom_call.1} parent=31 // pred_region
          %s281 = sand.u32 %s17, 1
          %s282 = scalar_lea.sflag [#allocation5], %s281
          %s283 = sand.u32 %s116, 1
          %s284 = smul.addr %s283, 128
          %s285 = scalar_lea.vmem [#allocation9], %s284
          %s287 = ssub.s32 2048, 2048
          %288 = vsyncadd %s282, %s287
          %s289 = smul.addr %s26, 16
          %s290 = sadd.s32 %s25, %s289
          %s291 = smul.addr %s290, 128
          %s292 = scalar_lea.hbm %s3, %s291
          %s293 = sshll.u32 %s285, 4
          %s294 = int_to_ptr.vmem [resolvable:$true] %s293
          %299 = dma.hbm_to_vmem [thread:$0]  %s292, 2048, %s294, %s282, 128, 128, 8
        $region36: #{tpu_custom_call.1} parent=31 // pred_fallthru
          _
      $region32: #{tpu_custom_call.1} parent=5 // pred_fallthru
        _
      %p300 = scmp.le.s32.totalorder 1, %s17
      %p301 = scmp.lt.s32.totalorder %s17, 5
      %p302 = pnand %p300, %p301
      %p303 = pneg %p302
      // Predicated region
      $region37: #{tpu_custom_call.1} parent=5 // pred_check
        _
      $region38: #{tpu_custom_call.1} parent=5 // pred_check_branch
        %305 = sbr.rel (%p302) target = $region40
      $region39: #{tpu_custom_call.1} parent=5 // pred_region
        %s306 = ssub.s32 %s17, 1
        // Predicated region
        $region41: #{tpu_custom_call.1} parent=39 // pred_check
          %p307 = pneg %p62
        $region42: #{tpu_custom_call.1} parent=39 // pred_check_branch
          %309 = sbr.rel (%p307) target = $region44
        $region43: #{tpu_custom_call.1} parent=39 // pred_region
          %310 = dma.done [#allocation5], 256
        $region44: #{tpu_custom_call.1} parent=39 // pred_fallthru
          _
        // Predicated region
        $region45: #{tpu_custom_call.1} parent=39 // pred_check
          %p311 = pneg %p83
        $region46: #{tpu_custom_call.1} parent=39 // pred_check_branch
          %313 = sbr.rel (%p311) target = $region48
        $region47: #{tpu_custom_call.1} parent=39 // pred_region
          %314 = dma.done [#allocation8], 2048
        $region48: #{tpu_custom_call.1} parent=39 // pred_fallthru
          _
        %s315 = sand.u32 %s22, 1
        %s316 = scalar_lea.sflag [#allocation5], %s315
        %s317 = sand.u32 %s119, 1
        %s318 = smul.addr %s317, 128
        %s319 = scalar_lea.vmem [#allocation9], %s318
        // Predicated region
        $region49: #{tpu_custom_call.1} parent=39 // pred_check
          %p320 = pneg %p132
        $region50: #{tpu_custom_call.1} parent=39 // pred_check_branch
          %322 = sbr.rel (%p320) target = $region52
        $region51: #{tpu_custom_call.1} parent=39 // pred_region
          %323 = dma.done %s316, 2048
        $region52: #{tpu_custom_call.1} parent=39 // pred_fallthru
          _
        // Predicated region
        $region53: #{tpu_custom_call.1} parent=39 // pred_check
          %p324 = pneg %p158
        $region54: #{tpu_custom_call.1} parent=39 // pred_check_branch
          %326 = sbr.rel (%p324) target = $region56
        $region55: #{tpu_custom_call.1} parent=39 // pred_region
          %327 = dma.done [#allocation8], 2048
        $region56: #{tpu_custom_call.1} parent=39 // pred_fallthru
          _
        %p328 = pneg %p62
        %p329 = pneg %p59
        %p330 = pneg %p83
        %p331 = pneg %p80
        %p332 = pneg %p104
        %p333 = pneg %p101
        %s334 = sand.u32 %s22, 1
        %s335 = scalar_lea.sflag [#allocation5], %s334
        %s336 = sand.u32 %s119, 1
        %s337 = smul.addr %s336, 128
        %s338 = scalar_lea.vmem [#allocation9], %s337
        %p339 = pneg %p132
        %p340 = pneg %p129
        %p341 = pneg %p158
        %p342 = pneg %p155
        %p343 = pneg %p186
        %p344 = pneg %p183
        %p345 = pneg %p212
        %p346 = pneg %p209
        %s347 = smul.u32 2, %s27
        %s348 = smul.u32 2, %s27
        %s349 = smul.u32 2, %s27
        %p350 = scmp.eq.s32.totalorder %s28, 0
        %p351 = scmp.eq.s32.totalorder %s29, 0
        %p352 = pnand %p350, %p351
        %p353 = pneg %p352
        // Predicated region
        $region57: #{tpu_custom_call.1} parent=39 // pred_check
          _
        $region58: #{tpu_custom_call.1} parent=39 // pred_check_branch
          %355 = sbr.rel (%p352) target = $region60
        $region59: #{tpu_custom_call.1} parent=39 // pred_region
          %v356 = vld [vmem:[#allocation4] sm:$0xff]
          %v357 = vld [vmem:[#allocation4 + $0x8] sm:$0xff]
          %v358 = vld [vmem:[#allocation7] sm:$0xff]
          %v359 = vld [vmem:[#allocation7 + $0x8] sm:$0xff]
          %v360 = vld [vmem:[#allocation7 + $0x10] sm:$0xff]
          %v361 = vld [vmem:[#allocation7 + $0x18] sm:$0xff]
          %v362 = vld [vmem:[#allocation7 + $0x20] sm:$0xff]
          %v363 = vld [vmem:[#allocation7 + $0x28] sm:$0xff]
          %v364 = vld [vmem:[#allocation7 + $0x30] sm:$0xff]
          %v365 = vld [vmem:[#allocation7 + $0x38] sm:$0xff]
          %v366 = vld [vmem:[#allocation7 + $0x40] sm:$0xff]
          %v367 = vld [vmem:[#allocation7 + $0x48] sm:$0xff]
          %v368 = vld [vmem:[#allocation7 + $0x50] sm:$0xff]
          %v369 = vld [vmem:[#allocation7 + $0x58] sm:$0xff]
          %v370 = vld [vmem:[#allocation7 + $0x60] sm:$0xff]
          %v371 = vld [vmem:[#allocation7 + $0x68] sm:$0xff]
          %v372 = vld [vmem:[#allocation7 + $0x70] sm:$0xff]
          %v373 = vld [vmem:[#allocation7 + $0x78] sm:$0xff]
          %v374 = vld [vmem:[%s2] sm:$0x1]
          %v376 = vlaneseq
          %v377 = vshrl.u32 %v376, 7
          %v378 = vsub.s32 0, %v377
          %v379 = vrot.slane %v374, %v378
          %381 = vmatprep.subr.mxu0 0.0
          %382 = vmatpush1.msra.mxu0 %v373
          %383 = vmatprep.subr.mxu0 0.0
          %384 = vmatpush1.msra.mxu0 %v372
          %385 = vmatprep.subr.mxu0 0.0
          %386 = vmatpush1.msra.mxu0 %v371
          %387 = vmatprep.subr.mxu0 0.0
          %388 = vmatpush1.msra.mxu0 %v370
          %389 = vmatprep.subr.mxu0 0.0
          %390 = vmatpush1.msra.mxu0 %v369
          %391 = vmatprep.subr.mxu0 0.0
          %392 = vmatpush1.msra.mxu0 %v368
          %393 = vmatprep.subr.mxu0 0.0
          %394 = vmatpush1.msra.mxu0 %v367
          %395 = vmatprep.subr.mxu0 0.0
          %396 = vmatpush1.msra.mxu0 %v366
          %397 = vmatprep.subr.mxu0 0.0
          %398 = vmatpush1.msra.mxu0 %v365
          %399 = vmatprep.subr.mxu0 0.0
          %400 = vmatpush1.msra.mxu0 %v364
          %401 = vmatprep.subr.mxu0 0.0
          %402 = vmatpush1.msra.mxu0 %v363
          %403 = vmatprep.subr.mxu0 0.0
          %404 = vmatpush1.msra.mxu0 %v362
          %405 = vmatprep.subr.mxu0 0.0
          %406 = vmatpush1.msra.mxu0 %v361
          %407 = vmatprep.subr.mxu0 0.0
          %408 = vmatpush1.msra.mxu0 %v360
          %409 = vmatprep.subr.mxu0 0.0
          %410 = vmatpush1.msra.mxu0 %v359
          %411 = vmatprep.subr.mxu0 0.0
          %412 = vmatpush1.msra.mxu0 %v358
          %413 = vmatprep.subr.mxu0 0.0
          %414 = vmatpush2.msra.mxu0 0.0
          %415 = vmatprep.subr.mxu0 0.0
          %416 = vmatpush2.msra.mxu0 0.0
          %417 = vmatprep.subr.mxu0 0.0
          %418 = vmatpush2.msra.mxu0 0.0
          %419 = vmatprep.subr.mxu0 0.0
          %420 = vmatpush2.msra.mxu0 0.0
          %421 = vmatprep.subr.mxu0 0.0
          %422 = vmatpush2.msra.mxu0 0.0
          %423 = vmatprep.subr.mxu0 0.0
          %424 = vmatpush2.msra.mxu0 0.0
          %425 = vmatprep.subr.mxu0 0.0
          %426 = vmatpush2.msra.mxu0 0.0
          %427 = vmatprep.subr.mxu0 0.0
          %428 = vmatpush2.msra.mxu0 0.0
          %429 = vmatprep.subr.mxu0 0.0
          %430 = vmatpush2.msra.mxu0 0.0
          %431 = vmatprep.subr.mxu0 0.0
          %432 = vmatpush2.msra.mxu0 0.0
          %433 = vmatprep.subr.mxu0 0.0
          %434 = vmatpush2.msra.mxu0 0.0
          %435 = vmatprep.subr.mxu0 0.0
          %436 = vmatpush2.msra.mxu0 0.0
          %437 = vmatprep.subr.mxu0 0.0
          %438 = vmatpush2.msra.mxu0 0.0
          %439 = vmatprep.subr.mxu0 0.0
          %440 = vmatpush2.msra.mxu0 0.0
          %441 = vmatprep.subr.mxu0 0.0
          %442 = vmatpush2.msra.mxu0 0.0
          %443 = vmatprep.subr.mxu0 0.0
          %444 = vmatpush2.msra.mxu0 0.0
          %445 = vmatprep.mubr.f32.mxu0 0.0
          %446 = vmatmul.mubr.f32.gmra.mxu0 %v356
          %v447 = vpop.f32.mrf.mxu0
          %v448 = vadd.f32 %v379, %v447
          %v449 = vpop.f32.mrf.mxu0
          %450 = vmatprep.mubr.f32.mxu0 0.0
          %451 = vmatmul.mubr.f32.gmra.mxu0 %v357
          %v452 = vpop.f32.mrf.mxu0
          %v453 = vadd.f32 %v379, %v452
          %v454 = vpop.f32.mrf.mxu0
          %455 = vdwg.mxu0
          %456 = vst [vmem:[#allocation12] sm:$0xff] %v448
          %457 = vst [vmem:[#allocation12 + $0x8] sm:$0xff] %v453
          %458 = vmax.xlane.f32.xlu0 %v448
          %v459 = vpop.xlane.xlu0 %458
          %460 = vmax.xlane.f32.xlu0 %v453
          %v461 = vpop.xlane.xlu0 %460
          %v462 = vsub.f32 %v448, %v459
          %v463 = vsub.f32 %v453, %v461
          %v464 = vmul.f32 %v462, 1.442695
          %v465 = vpow.pop %v464
          %v466 = vmul.f32 %v463, 1.442695
          %v467 = vpow.pop %v466
          %v468 = vlaneseq
          %v469 = vand.u32 %v468, 127
          %vm470 = vcmp.lt.s32.totalorder %v469, 4
          %v471 = vsel %vm470, %v465, -inf
          %v472 = vsel %vm470, %v467, -inf
          %473 = vmax.xlane.f32.xlu0 %v471
          %v474 = vpop.xlane.xlu0 %473
          %475 = vmax.xlane.f32.xlu0 %v472
          %v476 = vpop.xlane.xlu0 %475
          %vm477 = vcmp.eq.f32.partialorder %v471, %v474
          %vm478 = vcmp.eq.f32.partialorder %v472, %v476
          %v479 = vsel %vm477, %v469, 128
          %v480 = vsel %vm478, %v469, 128
          %v481 = vand.u32 %v479, 65535
          %v482 = vshra.s32 %v479, 16
          %v483 = vcvt.s32.f32 %v481
          %v484 = vcvt.s32.f32 %v482
          %485 = vmin.xlane.f32.xlu0 %v484
          %v486 = vpop.xlane.xlu0 %485
          %vm487 = vcmp.eq.f32.partialorder %v484, %v486
          %v488 = vsel %vm487, %v483, inf
          %489 = vmin.xlane.f32.xlu0 %v488
          %v490 = vpop.xlane.xlu0 %489
          %v491 = vcvt.f32.s32 %v490
          %v492 = vcvt.f32.s32 %v486
          %v493 = vshll.u32 %v492, 16
          %v494 = vadd.s32 %v493, %v491
          %v495 = vand.u32 %v480, 65535
          %v496 = vshra.s32 %v480, 16
          %v497 = vcvt.s32.f32 %v495
          %v498 = vcvt.s32.f32 %v496
          %499 = vmin.xlane.f32.xlu0 %v498
          %v500 = vpop.xlane.xlu0 %499
          %vm501 = vcmp.eq.f32.partialorder %v498, %v500
          %v502 = vsel %vm501, %v497, inf
          %503 = vmin.xlane.f32.xlu0 %v502
          %v504 = vpop.xlane.xlu0 %503
          %v505 = vcvt.f32.s32 %v504
          %v506 = vcvt.f32.s32 %v500
          %v507 = vshll.u32 %v506, 16
          %v508 = vadd.s32 %v507, %v505
          %vm509 = vcmp.eq.s32.totalorder %v469, %v494
          %vm510 = vcmp.eq.s32.totalorder %v469, %v508
          %v511 = vsel %vm509, 1, 0
          %v512 = vsel %vm510, 1, 0
          %v513 = vcvt.s32.f32 %v511
          %v514 = vcvt.s32.f32 %v512
          %v515 = vmul.f32 %v513, %v474
          %v516 = vmul.f32 %v514, %v476
          %v517 = vadd.f32 %v515, 0.0
          %v518 = vadd.f32 %v516, 0.0
          %v519 = vadd.f32 %v474, 0.0
          %v520 = vadd.f32 %v476, 0.0
          %v521 = vsel %vm509, -inf, %v471
          %v522 = vsel %vm510, -inf, %v472
          %523 = vmax.xlane.f32.xlu0 %v521
          %v524 = vpop.xlane.xlu0 %523
          %525 = vmax.xlane.f32.xlu0 %v522
          %v526 = vpop.xlane.xlu0 %525
          %vm527 = vcmp.eq.f32.partialorder %v521, %v524
          %vm528 = vcmp.eq.f32.partialorder %v522, %v526
          %v529 = vsel %vm527, %v469, 128
          %v530 = vsel %vm528, %v469, 128
          %v531 = vand.u32 %v529, 65535
          %v532 = vshra.s32 %v529, 16
          %v533 = vcvt.s32.f32 %v531
          %v534 = vcvt.s32.f32 %v532
          %535 = vmin.xlane.f32.xlu0 %v534
          %v536 = vpop.xlane.xlu0 %535
          %vm537 = vcmp.eq.f32.partialorder %v534, %v536
          %v538 = vsel %vm537, %v533, inf
          %539 = vmin.xlane.f32.xlu0 %v538
          %v540 = vpop.xlane.xlu0 %539
          %v541 = vcvt.f32.s32 %v540
          %v542 = vcvt.f32.s32 %v536
          %v543 = vshll.u32 %v542, 16
          %v544 = vadd.s32 %v543, %v541
          %v545 = vand.u32 %v530, 65535
          %v546 = vshra.s32 %v530, 16
          %v547 = vcvt.s32.f32 %v545
          %v548 = vcvt.s32.f32 %v546
          %549 = vmin.xlane.f32.xlu0 %v548
          %v550 = vpop.xlane.xlu0 %549
          %vm551 = vcmp.eq.f32.partialorder %v548, %v550
          %v552 = vsel %vm551, %v547, inf
          %553 = vmin.xlane.f32.xlu0 %v552
          %v554 = vpop.xlane.xlu0 %553
          %v555 = vcvt.f32.s32 %v554
          %v556 = vcvt.f32.s32 %v550
          %v557 = vshll.u32 %v556, 16
          %v558 = vadd.s32 %v557, %v555
          %vm559 = vcmp.eq.s32.totalorder %v469, %v544
          %vm560 = vcmp.eq.s32.totalorder %v469, %v558
          %v561 = vsel %vm559, 1, 0
          %v562 = vsel %vm560, 1, 0
          %v563 = vcvt.s32.f32 %v561
          %v564 = vcvt.s32.f32 %v562
          %v565 = vmul.f32 %v563, %v524
          %v566 = vmul.f32 %v564, %v526
          %v567 = vadd.f32 %v517, %v565
          %v568 = vadd.f32 %v518, %v566
          %v569 = vadd.f32 %v519, %v524
          %v570 = vadd.f32 %v520, %v526
          %v571 = vrcp.pop %v569
          %v572 = vrcp.pop %v570
          %v573 = vmul.f32 %v567, %v571
          %v574 = vmul.f32 %v568, %v572
          %575 = vst [vmem:[#allocation2] sm:$0xff] %v573
          %576 = vst [vmem:[#allocation2 + $0x8] sm:$0xff] %v574
        $region60: #{tpu_custom_call.1} parent=39 // pred_fallthru
          _
        // Predicated region
        $region61: #{tpu_custom_call.1} parent=39 // pred_check
          %p577 = pneg %p351
        $region62: #{tpu_custom_call.1} parent=39 // pred_check_branch
          %579 = sbr.rel (%p577) target = $region64
        $region63: #{tpu_custom_call.1} parent=39 // pred_region
          %580 = vst [vmem:[#allocation3] sm:$0xff] 0.0
          %581 = vst [vmem:[#allocation3 + $0x8] sm:$0xff] 0.0
        $region64: #{tpu_custom_call.1} parent=39 // pred_fallthru
          _
        %v582 = vlaneseq
        %v583 = vand.u32 %v582, 127
        %v584 = vstv %s29
        %vm585 = vcmp.eq.s32.totalorder %v583, %v584
        %v586 = vld [vmem:[#allocation2] sm:$0xff]
        %v587 = vld [vmem:[#allocation2 + $0x8] sm:$0xff]
        %v588 = vsel %vm585, %v586, 0.0
        %v589 = vsel %vm585, %v587, 0.0
        %590 = vadd.xlane.f32.xlu0 %v588
        %v591 = vpop.xlane.xlu0 %590
        %592 = vadd.xlane.f32.xlu0 %v589
        %v593 = vpop.xlane.xlu0 %592
        %v594 = vld [vmem:[#allocation4] sm:$0xff]
        %v595 = vld [vmem:[#allocation4 + $0x8] sm:$0xff]
        %v596 = vld [vmem:[%s319] sm:$0xff]
        %v597 = vld [vmem:[%s319 + $0x8] sm:$0xff]
        %v598 = vld [vmem:[%s319 + $0x10] sm:$0xff]
        %v599 = vld [vmem:[%s319 + $0x18] sm:$0xff]
        %v600 = vld [vmem:[%s319 + $0x20] sm:$0xff]
        %v601 = vld [vmem:[%s319 + $0x28] sm:$0xff]
        %v602 = vld [vmem:[%s319 + $0x30] sm:$0xff]
        %v603 = vld [vmem:[%s319 + $0x38] sm:$0xff]
        %v604 = vld [vmem:[%s319 + $0x40] sm:$0xff]
        %v605 = vld [vmem:[%s319 + $0x48] sm:$0xff]
        %v606 = vld [vmem:[%s319 + $0x50] sm:$0xff]
        %v607 = vld [vmem:[%s319 + $0x58] sm:$0xff]
        %v608 = vld [vmem:[%s319 + $0x60] sm:$0xff]
        %v609 = vld [vmem:[%s319 + $0x68] sm:$0xff]
        %v610 = vld [vmem:[%s319 + $0x70] sm:$0xff]
        %v611 = vld [vmem:[%s319 + $0x78] sm:$0xff]
        %612 = vmatprep.subr.mxu0 0.0
        %613 = vmatpush1.msra.mxu0 %v611
        %614 = vmatprep.subr.mxu0 0.0
        %615 = vmatpush1.msra.mxu0 %v610
        %616 = vmatprep.subr.mxu0 0.0
        %617 = vmatpush1.msra.mxu0 %v609
        %618 = vmatprep.subr.mxu0 0.0
        %619 = vmatpush1.msra.mxu0 %v608
        %620 = vmatprep.subr.mxu0 0.0
        %621 = vmatpush1.msra.mxu0 %v607
        %622 = vmatprep.subr.mxu0 0.0
        %623 = vmatpush1.msra.mxu0 %v606
        %624 = vmatprep.subr.mxu0 0.0
        %625 = vmatpush1.msra.mxu0 %v605
        %626 = vmatprep.subr.mxu0 0.0
        %627 = vmatpush1.msra.mxu0 %v604
        %628 = vmatprep.subr.mxu0 0.0
        %629 = vmatpush1.msra.mxu0 %v603
        %630 = vmatprep.subr.mxu0 0.0
        %631 = vmatpush1.msra.mxu0 %v602
        %632 = vmatprep.subr.mxu0 0.0
        %633 = vmatpush1.msra.mxu0 %v601
        %634 = vmatprep.subr.mxu0 0.0
        %635 = vmatpush1.msra.mxu0 %v600
        %636 = vmatprep.subr.mxu0 0.0
        %637 = vmatpush1.msra.mxu0 %v599
        %638 = vmatprep.subr.mxu0 0.0
        %639 = vmatpush1.msra.mxu0 %v598
        %640 = vmatprep.subr.mxu0 0.0
        %641 = vmatpush1.msra.mxu0 %v597
        %642 = vmatprep.subr.mxu0 0.0
        %643 = vmatpush1.msra.mxu0 %v596
        %644 = vmatprep.subr.mxu0 0.0
        %645 = vmatpush2.msra.mxu0 0.0
        %646 = vmatprep.subr.mxu0 0.0
        %647 = vmatpush2.msra.mxu0 0.0
        %648 = vmatprep.subr.mxu0 0.0
        %649 = vmatpush2.msra.mxu0 0.0
        %650 = vmatprep.subr.mxu0 0.0
        %651 = vmatpush2.msra.mxu0 0.0
        %652 = vmatprep.subr.mxu0 0.0
        %653 = vmatpush2.msra.mxu0 0.0
        %654 = vmatprep.subr.mxu0 0.0
        %655 = vmatpush2.msra.mxu0 0.0
        %656 = vmatprep.subr.mxu0 0.0
        %657 = vmatpush2.msra.mxu0 0.0
        %658 = vmatprep.subr.mxu0 0.0
        %659 = vmatpush2.msra.mxu0 0.0
        %660 = vmatprep.subr.mxu0 0.0
        %661 = vmatpush2.msra.mxu0 0.0
        %662 = vmatprep.subr.mxu0 0.0
        %663 = vmatpush2.msra.mxu0 0.0
        %664 = vmatprep.subr.mxu0 0.0
        %665 = vmatpush2.msra.mxu0 0.0
        %666 = vmatprep.subr.mxu0 0.0
        %667 = vmatpush2.msra.mxu0 0.0
        %668 = vmatprep.subr.mxu0 0.0
        %669 = vmatpush2.msra.mxu0 0.0
        %670 = vmatprep.subr.mxu0 0.0
        %671 = vmatpush2.msra.mxu0 0.0
        %672 = vmatprep.subr.mxu0 0.0
        %673 = vmatpush2.msra.mxu0 0.0
        %674 = vmatprep.subr.mxu0 0.0
        %675 = vmatpush2.msra.mxu0 0.0
        %676 = vmatprep.mubr.f32.mxu0 0.0
        %677 = vmatmul.mubr.f32.gmra.mxu0 %v594
        %v678 = vpop.f32.mrf.mxu0
        %v679 = vadd.f32 0.0, %v678
        %v680 = vpop.f32.mrf.mxu0
        %681 = vmatprep.mubr.f32.mxu0 0.0
        %682 = vmatmul.mubr.f32.gmra.mxu0 %v595
        %v683 = vpop.f32.mrf.mxu0
        %v684 = vadd.f32 0.0, %v683
        %v685 = vpop.f32.mrf.mxu0
        %686 = vdwg.mxu0
        %v687 = vld [vmem:[#allocation3] sm:$0xff]
        %v688 = vld [vmem:[#allocation3 + $0x8] sm:$0xff]
        %v689 = vmul.f32 %v591, %v679
        %v690 = vmul.f32 %v593, %v684
        %v691 = vadd.f32 %v687, %v689
        %v692 = vadd.f32 %v688, %v690
        %693 = vst [vmem:[#allocation3] sm:$0xff] %v691
        %694 = vst [vmem:[#allocation3 + $0x8] sm:$0xff] %v692
        %p695 = scmp.eq.s32.totalorder %s29, 3
        // Predicated region
        $region65: #{tpu_custom_call.1} parent=39 // pred_check
          %p696 = pneg %p695
        $region66: #{tpu_custom_call.1} parent=39 // pred_check_branch
          %698 = sbr.rel (%p696) target = $region68
        $region67: #{tpu_custom_call.1} parent=39 // pred_region
          %v699 = vld [vmem:[#allocation2] sm:$0xff]
          %v700 = vld [vmem:[#allocation2 + $0x8] sm:$0xff]
          %v701 = vld [vmem:[#allocation10] sm:$0xff]
          %v702 = vld [vmem:[#allocation10 + $0x8] sm:$0xff]
          %v703 = vld [vmem:[#allocation10 + $0x10] sm:$0xff]
          %v704 = vld [vmem:[#allocation10 + $0x18] sm:$0xff]
          %v705 = vld [vmem:[#allocation10 + $0x20] sm:$0xff]
          %v706 = vld [vmem:[#allocation10 + $0x28] sm:$0xff]
          %v707 = vld [vmem:[#allocation10 + $0x30] sm:$0xff]
          %v708 = vld [vmem:[#allocation10 + $0x38] sm:$0xff]
          %v709 = vld [vmem:[#allocation10 + $0x40] sm:$0xff]
          %v710 = vld [vmem:[#allocation10 + $0x48] sm:$0xff]
          %v711 = vld [vmem:[#allocation10 + $0x50] sm:$0xff]
          %v712 = vld [vmem:[#allocation10 + $0x58] sm:$0xff]
          %v713 = vld [vmem:[#allocation10 + $0x60] sm:$0xff]
          %v714 = vld [vmem:[#allocation10 + $0x68] sm:$0xff]
          %v715 = vld [vmem:[#allocation10 + $0x70] sm:$0xff]
          %v716 = vld [vmem:[#allocation10 + $0x78] sm:$0xff]
          %717 = vmatprep.subr.mxu0 0.0
          %718 = vmatpush1.msra.mxu0 %v716
          %719 = vmatprep.subr.mxu0 0.0
          %720 = vmatpush1.msra.mxu0 %v715
          %721 = vmatprep.subr.mxu0 0.0
          %722 = vmatpush1.msra.mxu0 %v714
          %723 = vmatprep.subr.mxu0 0.0
          %724 = vmatpush1.msra.mxu0 %v713
          %725 = vmatprep.subr.mxu0 0.0
          %726 = vmatpush1.msra.mxu0 %v712
          %727 = vmatprep.subr.mxu0 0.0
          %728 = vmatpush1.msra.mxu0 %v711
          %729 = vmatprep.subr.mxu0 0.0
          %730 = vmatpush1.msra.mxu0 %v710
          %731 = vmatprep.subr.mxu0 0.0
          %732 = vmatpush1.msra.mxu0 %v709
          %733 = vmatprep.subr.mxu0 0.0
          %734 = vmatpush1.msra.mxu0 %v708
          %735 = vmatprep.subr.mxu0 0.0
          %736 = vmatpush1.msra.mxu0 %v707
          %737 = vmatprep.subr.mxu0 0.0
          %738 = vmatpush1.msra.mxu0 %v706
          %739 = vmatprep.subr.mxu0 0.0
          %740 = vmatpush1.msra.mxu0 %v705
          %741 = vmatprep.subr.mxu0 0.0
          %742 = vmatpush1.msra.mxu0 %v704
          %743 = vmatprep.subr.mxu0 0.0
          %744 = vmatpush1.msra.mxu0 %v703
          %745 = vmatprep.subr.mxu0 0.0
          %746 = vmatpush1.msra.mxu0 %v702
          %747 = vmatprep.subr.mxu0 0.0
          %748 = vmatpush1.msra.mxu0 %v701
          %749 = vmatprep.subr.mxu0 0.0
          %750 = vmatpush2.msra.mxu0 0.0
          %751 = vmatprep.subr.mxu0 0.0
          %752 = vmatpush2.msra.mxu0 0.0
          %753 = vmatprep.subr.mxu0 0.0
          %754 = vmatpush2.msra.mxu0 0.0
          %755 = vmatprep.subr.mxu0 0.0
          %756 = vmatpush2.msra.mxu0 0.0
          %757 = vmatprep.subr.mxu0 0.0
          %758 = vmatpush2.msra.mxu0 0.0
          %759 = vmatprep.subr.mxu0 0.0
          %760 = vmatpush2.msra.mxu0 0.0
          %761 = vmatprep.subr.mxu0 0.0
          %762 = vmatpush2.msra.mxu0 0.0
          %763 = vmatprep.subr.mxu0 0.0
          %764 = vmatpush2.msra.mxu0 0.0
          %765 = vmatprep.subr.mxu0 0.0
          %766 = vmatpush2.msra.mxu0 0.0
          %767 = vmatprep.subr.mxu0 0.0
          %768 = vmatpush2.msra.mxu0 0.0
          %769 = vmatprep.subr.mxu0 0.0
          %770 = vmatpush2.msra.mxu0 0.0
          %771 = vmatprep.subr.mxu0 0.0
          %772 = vmatpush2.msra.mxu0 0.0
          %773 = vmatprep.subr.mxu0 0.0
          %774 = vmatpush2.msra.mxu0 0.0
          %775 = vmatprep.subr.mxu0 0.0
          %776 = vmatpush2.msra.mxu0 0.0
          %777 = vmatprep.subr.mxu0 0.0
          %778 = vmatpush2.msra.mxu0 0.0
          %779 = vmatprep.subr.mxu0 0.0
          %780 = vmatpush2.msra.mxu0 0.0
          %781 = vmatprep.mubr.f32.mxu0 0.0
          %782 = vmatmul.mubr.f32.gmra.mxu0 %v699
          %v783 = vpop.f32.mrf.mxu0
          %v784 = vadd.f32 0.0, %v783
          %v785 = vpop.f32.mrf.mxu0
          %786 = vmatprep.mubr.f32.mxu0 0.0
          %787 = vmatmul.mubr.f32.gmra.mxu0 %v700
          %v788 = vpop.f32.mrf.mxu0
          %v789 = vadd.f32 0.0, %v788
          %v790 = vpop.f32.mrf.mxu0
          %791 = vdwg.mxu0
          %v792 = vld [vmem:[#allocation3] sm:$0xff]
          %v793 = vld [vmem:[#allocation3 + $0x8] sm:$0xff]
          %v794 = vadd.f32 %v792, %v784
          %v795 = vadd.f32 %v793, %v789
          %796 = vst [vmem:[#allocation11] sm:$0xff] %v794
          %797 = vst [vmem:[#allocation11 + $0x8] sm:$0xff] %v795
        $region68: #{tpu_custom_call.1} parent=39 // pred_fallthru
          _
        // Predicated region
        $region69: #{tpu_custom_call.1} parent=39 // pred_check
          %p798 = pneg %p183
        $region70: #{tpu_custom_call.1} parent=39 // pred_check_branch
          %800 = sbr.rel (%p798) target = $region72
        $region71: #{tpu_custom_call.1} parent=39 // pred_region
          %s801 = smul.u32 2, %s27
          %s803 = ssub.s32 256, 256
          %804 = vsyncadd [#allocation6], %s803
          %s805 = sadd.s32 %s28, %s801
          %s806 = smul.addr %s805, 128
          %s807 = scalar_lea.hbm %s5, %s806
          %s808 = sshll.u32 [#allocation11], 4
          %s809 = int_to_ptr.vmem [resolvable:$true] %s808
          %814 = dma.vmem_to_hbm [thread:$0]  %s809, 256, %s807, [#allocation6], 128, 128, 8
        $region72: #{tpu_custom_call.1} parent=39 // pred_fallthru
          _
        // Predicated region
        $region73: #{tpu_custom_call.1} parent=39 // pred_check
          %p815 = pneg %p209
        $region74: #{tpu_custom_call.1} parent=39 // pred_check_branch
          %817 = sbr.rel (%p815) target = $region76
        $region75: #{tpu_custom_call.1} parent=39 // pred_region
          %s818 = smul.u32 2, %s27
          %s820 = ssub.s32 256, 256
          %821 = vsyncadd [#allocation13], %s820
          %s822 = smul.addr %s818, 128
          %s823 = scalar_lea.hbm %s6, %s822
          %s824 = sshll.u32 [#allocation12], 4
          %s825 = int_to_ptr.vmem [resolvable:$true] %s824
          %830 = dma.vmem_to_hbm [thread:$0]  %s825, 256, %s823, [#allocation13], 128, 128, 8
        $region76: #{tpu_custom_call.1} parent=39 // pred_fallthru
          _
        // Predicated region
        $region77: #{tpu_custom_call.1} parent=39 // pred_check
          %p831 = pneg %p183
        $region78: #{tpu_custom_call.1} parent=39 // pred_check_branch
          %833 = sbr.rel (%p831) target = $region80
        $region79: #{tpu_custom_call.1} parent=39 // pred_region
          %834 = dma.done [#allocation6], 256
        $region80: #{tpu_custom_call.1} parent=39 // pred_fallthru
          _
        // Predicated region
        $region81: #{tpu_custom_call.1} parent=39 // pred_check
          %p835 = pneg %p209
        $region82: #{tpu_custom_call.1} parent=39 // pred_check_branch
          %837 = sbr.rel (%p835) target = $region84
        $region83: #{tpu_custom_call.1} parent=39 // pred_region
          %838 = dma.done [#allocation13], 256
        $region84: #{tpu_custom_call.1} parent=39 // pred_fallthru
          _
      $region40: #{tpu_custom_call.1} parent=5 // pred_fallthru
        _
      %p839 = scmp.le.s32.totalorder 2, %s17
      // Predicated region
      $region85: #{tpu_custom_call.1} parent=5 // pred_check
        %p840 = pneg %p839
      $region86: #{tpu_custom_call.1} parent=5 // pred_check_branch
        %842 = sbr.rel (%p840) target = $region88
      $region87: #{tpu_custom_call.1} parent=5 // pred_region
        %s843 = ssub.s32 %s17, 2
      $region88: #{tpu_custom_call.1} parent=5 // pred_fallthru
        _
    $region6: #{tpu_custom_call.1} parent=1 // loop_footer
      %s21 = sadd.s32 1, %s17
    $region7: #{tpu_custom_call.1} parent=1 // loop_footer_branch
      %16 = sbr.rel target = $region3
    $region8: #{tpu_custom_call.1} parent=1 // loop_exit
      _
    %844 = vsyncpa [#allocation5], 1
    %s845 = scalar_lea.sflag [#allocation5], 1
    %846 = vsyncpa %s845, 1
    %847 = vsyncpa [#allocation8], 1
    %848 = vsyncpa [#allocation6], 1
    %s849 = scalar_lea.sflag [#allocation6], 1
    %850 = vsyncpa %s849, 1
    %851 = vsyncpa [#allocation13], 1

</llo_original>
